<compile_context>
chip_gen: v5e
topology: v5e:2x2
jax: 0.10.0
libtpu: 0.0.40
codegen_flags: <defaults>
</compile_context>

<pallas_src>
import jax
import jax.numpy as jnp
from jax.experimental import pallas as pl
from jax.experimental.pallas import tpu as pltpu


def residual_stack_kernel(x_ref, w1_ref, w2_ref, o_ref):
    """One grid step = `b_blk` whole batch elements, flattened to (b_blk*L, C) rows.

    x_ref : (b_blk, C, L)        f32  activations, PyTorch NCL layout
    w1_ref: (n_layers, 3, C, R)  bf16 conv-3 weights, w1[l,k,c,r] = conv1.weight[r,c,k]
    w2_ref: (n_layers, R, C)     bf16 conv-1 weights, w2[l,r,c]   = conv2.weight[c,r,0]
    o_ref : (b_blk, C, L)        f32
    """
    b_blk, C, L = x_ref.shape
    n_layers = w1_ref.shape[0]
    R = w1_ref.shape[-1]
    rows = b_blk * L

    # ---- NCL -> (rows, C): channels on the 128-lane axis (MXU contraction axis).
    # Per-batch 2-D f32 transposes use the XLU slot; the concatenate offsets are
    # multiples of L (a multiple of 8 here), so the sublane merge is aligned.
    pieces = [jnp.transpose(x_ref[i]) for i in range(b_blk)]          # each (L, C)
    x = pieces[0] if b_blk == 1 else jnp.concatenate(pieces, axis=0)  # (rows, C)
    x = x.astype(jnp.float32)

    # padding=1 emulation: rows at a per-sequence boundary get the corresponding
    # neighbour-tap contribution zeroed.  Hoisted out of the layer loop
    # (broadcast_in_dim is not CSE'd by JAX).
    row = jax.lax.broadcasted_iota(jnp.int32, (rows, R), 0)
    pos = row % L
    not_first = pos != 0          # row has a valid left neighbour within its sequence
    not_last = pos != (L - 1)     # row has a valid right neighbour within its sequence

    # TODO(synk): for large n_layers make `layer` an "arbitrary" grid axis and
    #             stream per-layer weight blocks instead of this static unroll.
    for layer in range(n_layers):
        w1_l = w1_ref[layer]                        # (3, C, R) bf16, resident
        w2_l = w2_ref[layer]                        # (R, C)    bf16

        xr = jnp.maximum(x, 0.0)                    # ReLU, f32 (VPU; no bf16 math on v5e)
        lhs = xr.astype(jnp.bfloat16)               # single cast at the MXU boundary

        # kernel_size=3 conv == three accumulating channel matmuls on the same LHS.
        # Shifting the small (rows, R) results (roll commutes with the row-wise dot)
        # avoids a non-128-aligned lane concat and keeps vreg pressure low; the
        # rolls go through the XLU, the masks/additions stay in f32 on the VPU.
        h_prev = jnp.dot(lhs, w1_l[0], preferred_element_type=jnp.float32)
        h_mid = jnp.dot(lhs, w1_l[1], preferred_element_type=jnp.float32)
        h_next = jnp.dot(lhs, w1_l[2], preferred_element_type=jnp.float32)
        h = (h_mid
             + jnp.where(not_first, pltpu.roll(h_prev, shift=1, axis=0), 0.0)
             + jnp.where(not_last, pltpu.roll(h_next, shift=rows - 1, axis=0), 0.0))

        hr = jnp.maximum(h, 0.0)                    # ReLU, f32
        # Conv1d(kernel_size=1, no bias) == channel matmul.
        y = jnp.dot(hr.astype(jnp.bfloat16), w2_l,
                    preferred_element_type=jnp.float32)

        x = x + y                                   # residual add, f32

    out = jnp.maximum(x, 0.0)                       # final ReLU, f32

    # ---- (rows, C) -> NCL store (per-batch 2-D transposes, static slices).
    # TODO(synk): C=32 < 128 lanes means masked vst here; for large problems
    #             present a lane-dense (multiple-of-128 last dim) output slab.
    for i in range(b_blk):
        o_ref[i] = jnp.transpose(out[i * L:(i + 1) * L, :]).astype(o_ref.dtype)


def residual_stack_pallas(x_ncl, w1, w2, *, num_blocks=None,
                          vmem_limit_bytes=32 * 1024 * 1024):
    """ResidualStack forward in PyTorch NCL layout.

    x_ncl: (B, C, L) f32
    w1   : (n_layers, 3, C, R)  with w1[l, k, c, r] = torch conv1.weight[r, c, k]
    w2   : (n_layers, R, C)     with w2[l, r, c]    = torch conv2.weight[c, r, 0]
    """
    B, C, L = x_ncl.shape
    n_layers = w1.shape[0]
    R = w1.shape[-1]

    # Few, fat grid steps over whole batch elements (block boundaries must be
    # sequence boundaries for the roll+mask padding emulation).  Keep >= 2 steps
    # when possible so both v7x TensorCores get work.
    if num_blocks is None:
        num_blocks = 2 if (B % 2 == 0 and B >= 2) else 1
    assert B % num_blocks == 0, "num_blocks must divide the batch"
    b_blk = B // num_blocks

    w1b = w1.astype(jnp.bfloat16)
    w2b = w2.astype(jnp.bfloat16)

    # TODO(synk): weights are grid-invariant; single-buffer them
    #             (pipeline_mode=pl.Buffered(1)) once VMEM matters (v7x: 64 MiB).
    # TODO(synk): for very large B*L, tile rows further and size the tile from
    #             pltpu.get_tpu_info().vmem_capacity_bytes rather than a fixed limit.
    # TODO(synk): input_output_aliases={0: 0} is valid here (same shape/dtype) and
    #             saves an HBM allocation when the caller donates x.
    return pl.pallas_call(
        residual_stack_kernel,
        out_shape=jax.ShapeDtypeStruct((B, C, L), x_ncl.dtype),
        grid=(num_blocks,),
        in_specs=[
            pl.BlockSpec((b_blk, C, L), lambda g: (g, 0, 0)),           # activations
            pl.BlockSpec((n_layers, 3, C, R), lambda g: (0, 0, 0, 0)),  # w1 (resident)
            pl.BlockSpec((n_layers, R, C), lambda g: (0, 0, 0)),        # w2 (resident)
        ],
        out_specs=pl.BlockSpec((b_blk, C, L), lambda g: (g, 0, 0)),
        compiler_params=pltpu.CompilerParams(
            dimension_semantics=("parallel",),      # v7x megacore over batch blocks
            vmem_limit_bytes=vmem_limit_bytes,
        ),
    )(x_ncl, w1b, w2b)


def residual_stack_ref(x_ncl, w1, w2):
    """Pure-JAX reference with the same bf16-operand / f32-accumulate matmul math."""
    x = jnp.transpose(x_ncl, (0, 2, 1)).astype(jnp.float32)     # (B, L, C)
    B, L, C = x.shape
    n_layers = w1.shape[0]
    R = w1.shape[-1]
    w1b = w1.astype(jnp.bfloat16)
    w2b = w2.astype(jnp.bfloat16)
    for layer in range(n_layers):
        xr = jnp.maximum(x, 0.0)
        xpad = jnp.pad(xr, ((0, 0), (1, 1), (0, 0)))
        h = jnp.zeros((B, L, R), jnp.float32)
        for k in range(3):
            h = h + jnp.einsum(
                "blc,cr->blr",
                xpad[:, k:k + L, :].astype(jnp.bfloat16),
                w1b[layer, k],
                preferred_element_type=jnp.float32)
        hr = jnp.maximum(h, 0.0).astype(jnp.bfloat16)
        y = jnp.einsum("blr,rc->blc", hr, w2b[layer],
                       preferred_element_type=jnp.float32)
        x = x + y
    return jnp.transpose(jnp.maximum(x, 0.0), (0, 2, 1))


if __name__ == "__main__":
    # Module hyperparameters (in_channels must equal num_hiddens for the skip add).
    in_channels = 32
    num_hiddens = 32
    num_residual_hiddens = 16
    num_residual_layers = 2
    B, L = 2, 16

    key = jax.random.PRNGKey(0)
    kx, kw1, kw2 = jax.random.split(key, 3)

    # Input in PyTorch NCL layout: (batch, channels, length).
    x = jax.random.normal(kx, (B, in_channels, L), dtype=jnp.float32)

    # Deterministic synthetic weights.
    #   w1[layer, k, c_in, r_out] <-> conv1.weight[r_out, c_in, k]
    #   w2[layer, r_in, c_out]    <-> conv2.weight[c_out, r_in, 0]
    w1 = 0.1 * jax.random.normal(
        kw1, (num_residual_layers, 3, in_channels, num_residual_hiddens),
        dtype=jnp.float32)
    w2 = 0.1 * jax.random.normal(
        kw2, (num_residual_layers, num_residual_hiddens, num_hiddens),
        dtype=jnp.float32)

    out = jax.block_until_ready(residual_stack_pallas(x, w1, w2))
    ref = jax.block_until_ready(residual_stack_ref(x, w1, w2))
    assert out.shape == (B, num_hiddens, L)
    assert jnp.allclose(out, ref, atol=1e-3, rtol=1e-3), \
        "Pallas kernel mismatch vs JAX reference (2-block path)"

    # Single-block path (odd batch / B == 1) + different L, exercising the
    # roll+mask padding emulation at another sequence length.
    x1 = jax.random.normal(jax.random.PRNGKey(1), (1, in_channels, 8),
                           dtype=jnp.float32)
    out1 = jax.block_until_ready(residual_stack_pallas(x1, w1, w2))
    ref1 = residual_stack_ref(x1, w1, w2)
    assert jnp.allclose(out1, ref1, atol=1e-3, rtol=1e-3), \
        "Pallas kernel mismatch vs JAX reference (1-block path)"

    print("KERNEL_OK")
</pallas_src>

<mosaic_0001>
module attributes {stable_mosaic.version = 11 : i64} {
  func.func @residual_stack_kernel(%arg0: i32, %arg1: memref<1x32x16xf32, #tpu.memory_space<vmem>>, %arg2: memref<2x3x32x16xbf16, #tpu.memory_space<vmem>>, %arg3: memref<2x16x32xbf16, #tpu.memory_space<vmem>>, %arg4: memref<1x32x16xf32, #tpu.memory_space<vmem>>) attributes {dimension_semantics = [#tpu.dimension_semantics<parallel>], iteration_bounds = array<i64: 2>, scalar_prefetch = 0 : i64, scratch_operands = 0 : i64, tpu.core_type = #tpu.core_type<tc>, window_params = [{transform_indices = @transform_0, window_bounds = array<i64: 1, 32, 16>}, {pipeline_mode = #tpu.pipeline_mode<synchronous>, transform_indices = @transform_1, window_bounds = array<i64: 2, 3, 32, 16>}, {pipeline_mode = #tpu.pipeline_mode<synchronous>, transform_indices = @transform_2, window_bounds = array<i64: 2, 16, 32>}, {transform_indices = @transform_3, window_bounds = array<i64: 1, 32, 16>}]} {
    %c0 = arith.constant 0 : index
    %c0_0 = arith.constant 0 : index
    %c0_1 = arith.constant 0 : index
    %0 = vector.load %arg1[%c0, %c0_0, %c0_1] : memref<1x32x16xf32, #tpu.memory_space<vmem>>, vector<1x32x16xf32>
    %1 = vector.shape_cast %0 : vector<1x32x16xf32> to vector<32x16xf32>
    %2 = tpu.transpose %1, [1, 0] : vector<32x16xf32> -> vector<16x32xf32>
    %3 = tpu.iota {dimensions = array<i32: 0>} : vector<16x16xi32>
    %c16_i32 = arith.constant 16 : i32
    %c0_i32 = arith.constant 0 : i32
    %4 = arith.cmpi eq, %c16_i32, %c0_i32 : i32
    %c1_i32 = arith.constant 1 : i32
    %5 = arith.select %4, %c1_i32, %c16_i32 : i32
    %6 = vector.broadcast %5 : i32 to vector<16x16xi32>
    %7 = arith.remsi %3, %6 : vector<16x16xi32>
    %c0_i32_2 = arith.constant 0 : i32
    %8 = vector.broadcast %c0_i32_2 : i32 to vector<16x16xi32>
    %9 = arith.cmpi ne, %7, %8 : vector<16x16xi32>
    %c0_i32_3 = arith.constant 0 : i32
    %10 = vector.broadcast %c0_i32_3 : i32 to vector<16x16xi32>
    %11 = arith.cmpi slt, %7, %10 : vector<16x16xi32>
    %c0_i32_4 = arith.constant 0 : i32
    %12 = arith.cmpi slt, %5, %c0_i32_4 : i32
    %13 = vector.broadcast %12 : i1 to vector<16x16xi1>
    %14 = vector.broadcast %13 : vector<16x16xi1> to vector<16x16xi1>
    %15 = arith.xori %11, %14 : vector<16x16xi1>
    %16 = arith.andi %15, %9 : vector<16x16xi1>
    %17 = vector.broadcast %5 : i32 to vector<16x16xi32>
    %18 = arith.addi %7, %17 : vector<16x16xi32>
    %19 = arith.select %16, %18, %7 : vector<16x16xi1>, vector<16x16xi32>
    %c0_i32_5 = arith.constant 0 : i32
    %20 = vector.broadcast %c0_i32_5 : i32 to vector<16x16xi32>
    %21 = arith.cmpi ne, %19, %20 : vector<16x16xi32>
    %c15_i32 = arith.constant 15 : i32
    %22 = vector.broadcast %c15_i32 : i32 to vector<16x16xi32>
    %23 = arith.cmpi ne, %19, %22 : vector<16x16xi32>
    %c0_6 = arith.constant 0 : index
    %c0_7 = arith.constant 0 : index
    %c0_8 = arith.constant 0 : index
    %c0_9 = arith.constant 0 : index
    %24 = vector.load %arg2[%c0_6, %c0_7, %c0_8, %c0_9] : memref<2x3x32x16xbf16, #tpu.memory_space<vmem>>, vector<1x3x32x16xbf16>
    %25 = vector.shape_cast %24 : vector<1x3x32x16xbf16> to vector<3x32x16xbf16>
    %c0_10 = arith.constant 0 : index
    %c0_11 = arith.constant 0 : index
    %c0_12 = arith.constant 0 : index
    %26 = vector.load %arg3[%c0_10, %c0_11, %c0_12] : memref<2x16x32xbf16, #tpu.memory_space<vmem>>, vector<1x16x32xbf16>
    %27 = vector.shape_cast %26 : vector<1x16x32xbf16> to vector<16x32xbf16>
    %cst = arith.constant 0.000000e+00 : f32
    %28 = vector.broadcast %cst : f32 to vector<16x32xf32>
    %29 = arith.maximumf %2, %28 : vector<16x32xf32>
    %30 = arith.truncf %29 : vector<16x32xf32> to vector<16x32xbf16>
    %31 = vector.extract_strided_slice %25 {offsets = [0, 0, 0], sizes = [1, 32, 16], strides = [1, 1, 1]} : vector<3x32x16xbf16> to vector<1x32x16xbf16>
    %32 = vector.shape_cast %31 : vector<1x32x16xbf16> to vector<32x16xbf16>
    %cst_13 = arith.constant dense<0.000000e+00> : vector<16x16xf32>
    %33 = tpu.matmul %30, %32, %cst_13 {dimension_numbers = #tpu.dot_dimension_numbers<[1], [0], [0], [1], [0, 0, 1, 1], [], []>} : vector<16x32xbf16>, vector<32x16xbf16>, vector<16x16xf32> -> vector<16x16xf32>
    %34 = vector.extract_strided_slice %25 {offsets = [1, 0, 0], sizes = [1, 32, 16], strides = [1, 1, 1]} : vector<3x32x16xbf16> to vector<1x32x16xbf16>
    %35 = vector.shape_cast %34 : vector<1x32x16xbf16> to vector<32x16xbf16>
    %cst_14 = arith.constant dense<0.000000e+00> : vector<16x16xf32>
    %36 = tpu.matmul %30, %35, %cst_14 {dimension_numbers = #tpu.dot_dimension_numbers<[1], [0], [0], [1], [0, 0, 1, 1], [], []>} : vector<16x32xbf16>, vector<32x16xbf16>, vector<16x16xf32> -> vector<16x16xf32>
    %37 = vector.extract_strided_slice %25 {offsets = [2, 0, 0], sizes = [1, 32, 16], strides = [1, 1, 1]} : vector<3x32x16xbf16> to vector<1x32x16xbf16>
    %38 = vector.shape_cast %37 : vector<1x32x16xbf16> to vector<32x16xbf16>
    %cst_15 = arith.constant dense<0.000000e+00> : vector<16x16xf32>
    %39 = tpu.matmul %30, %38, %cst_15 {dimension_numbers = #tpu.dot_dimension_numbers<[1], [0], [0], [1], [0, 0, 1, 1], [], []>} : vector<16x32xbf16>, vector<32x16xbf16>, vector<16x16xf32> -> vector<16x16xf32>
    %c1_i32_16 = arith.constant 1 : i32
    %40 = tpu.dynamic_rotate %33 by %c1_i32_16 dim 0 : vector<16x16xf32>, i32 -> vector<16x16xf32>
    %cst_17 = arith.constant 0.000000e+00 : f32
    %41 = vector.broadcast %cst_17 : f32 to vector<16x16xf32>
    %42 = arith.select %21, %40, %41 : vector<16x16xi1>, vector<16x16xf32>
    %43 = arith.addf %36, %42 : vector<16x16xf32>
    %c15_i32_18 = arith.constant 15 : i32
    %44 = tpu.dynamic_rotate %39 by %c15_i32_18 dim 0 : vector<16x16xf32>, i32 -> vector<16x16xf32>
    %cst_19 = arith.constant 0.000000e+00 : f32
    %45 = vector.broadcast %cst_19 : f32 to vector<16x16xf32>
    %46 = arith.select %23, %44, %45 : vector<16x16xi1>, vector<16x16xf32>
    %47 = arith.addf %43, %46 : vector<16x16xf32>
    %cst_20 = arith.constant 0.000000e+00 : f32
    %48 = vector.broadcast %cst_20 : f32 to vector<16x16xf32>
    %49 = arith.maximumf %47, %48 : vector<16x16xf32>
    %50 = arith.truncf %49 : vector<16x16xf32> to vector<16x16xbf16>
    %cst_21 = arith.constant dense<0.000000e+00> : vector<16x32xf32>
    %51 = tpu.matmul %50, %27, %cst_21 {dimension_numbers = #tpu.dot_dimension_numbers<[1], [0], [0], [1], [0, 0, 1, 1], [], []>} : vector<16x16xbf16>, vector<16x32xbf16>, vector<16x32xf32> -> vector<16x32xf32>
    %52 = arith.addf %2, %51 : vector<16x32xf32>
    %c1 = arith.constant 1 : index
    %c0_22 = arith.constant 0 : index
    %c0_23 = arith.constant 0 : index
    %c0_24 = arith.constant 0 : index
    %53 = vector.load %arg2[%c1, %c0_22, %c0_23, %c0_24] : memref<2x3x32x16xbf16, #tpu.memory_space<vmem>>, vector<1x3x32x16xbf16>
    %54 = vector.shape_cast %53 : vector<1x3x32x16xbf16> to vector<3x32x16xbf16>
    %c1_25 = arith.constant 1 : index
    %c0_26 = arith.constant 0 : index
    %c0_27 = arith.constant 0 : index
    %55 = vector.load %arg3[%c1_25, %c0_26, %c0_27] : memref<2x16x32xbf16, #tpu.memory_space<vmem>>, vector<1x16x32xbf16>
    %56 = vector.shape_cast %55 : vector<1x16x32xbf16> to vector<16x32xbf16>
    %cst_28 = arith.constant 0.000000e+00 : f32
    %57 = vector.broadcast %cst_28 : f32 to vector<16x32xf32>
    %58 = arith.maximumf %52, %57 : vector<16x32xf32>
    %59 = arith.truncf %58 : vector<16x32xf32> to vector<16x32xbf16>
    %60 = vector.extract_strided_slice %54 {offsets = [0, 0, 0], sizes = [1, 32, 16], strides = [1, 1, 1]} : vector<3x32x16xbf16> to vector<1x32x16xbf16>
    %61 = vector.shape_cast %60 : vector<1x32x16xbf16> to vector<32x16xbf16>
    %cst_29 = arith.constant dense<0.000000e+00> : vector<16x16xf32>
    %62 = tpu.matmul %59, %61, %cst_29 {dimension_numbers = #tpu.dot_dimension_numbers<[1], [0], [0], [1], [0, 0, 1, 1], [], []>} : vector<16x32xbf16>, vector<32x16xbf16>, vector<16x16xf32> -> vector<16x16xf32>
    %63 = vector.extract_strided_slice %54 {offsets = [1, 0, 0], sizes = [1, 32, 16], strides = [1, 1, 1]} : vector<3x32x16xbf16> to vector<1x32x16xbf16>
    %64 = vector.shape_cast %63 : vector<1x32x16xbf16> to vector<32x16xbf16>
    %cst_30 = arith.constant dense<0.000000e+00> : vector<16x16xf32>
    %65 = tpu.matmul %59, %64, %cst_30 {dimension_numbers = #tpu.dot_dimension_numbers<[1], [0], [0], [1], [0, 0, 1, 1], [], []>} : vector<16x32xbf16>, vector<32x16xbf16>, vector<16x16xf32> -> vector<16x16xf32>
    %66 = vector.extract_strided_slice %54 {offsets = [2, 0, 0], sizes = [1, 32, 16], strides = [1, 1, 1]} : vector<3x32x16xbf16> to vector<1x32x16xbf16>
    %67 = vector.shape_cast %66 : vector<1x32x16xbf16> to vector<32x16xbf16>
    %cst_31 = arith.constant dense<0.000000e+00> : vector<16x16xf32>
    %68 = tpu.matmul %59, %67, %cst_31 {dimension_numbers = #tpu.dot_dimension_numbers<[1], [0], [0], [1], [0, 0, 1, 1], [], []>} : vector<16x32xbf16>, vector<32x16xbf16>, vector<16x16xf32> -> vector<16x16xf32>
    %c1_i32_32 = arith.constant 1 : i32
    %69 = tpu.dynamic_rotate %62 by %c1_i32_32 dim 0 : vector<16x16xf32>, i32 -> vector<16x16xf32>
    %cst_33 = arith.constant 0.000000e+00 : f32
    %70 = vector.broadcast %cst_33 : f32 to vector<16x16xf32>
    %71 = arith.select %21, %69, %70 : vector<16x16xi1>, vector<16x16xf32>
    %72 = arith.addf %65, %71 : vector<16x16xf32>
    %c15_i32_34 = arith.constant 15 : i32
    %73 = tpu.dynamic_rotate %68 by %c15_i32_34 dim 0 : vector<16x16xf32>, i32 -> vector<16x16xf32>
    %cst_35 = arith.constant 0.000000e+00 : f32
    %74 = vector.broadcast %cst_35 : f32 to vector<16x16xf32>
    %75 = arith.select %23, %73, %74 : vector<16x16xi1>, vector<16x16xf32>
    %76 = arith.addf %72, %75 : vector<16x16xf32>
    %cst_36 = arith.constant 0.000000e+00 : f32
    %77 = vector.broadcast %cst_36 : f32 to vector<16x16xf32>
    %78 = arith.maximumf %76, %77 : vector<16x16xf32>
    %79 = arith.truncf %78 : vector<16x16xf32> to vector<16x16xbf16>
    %cst_37 = arith.constant dense<0.000000e+00> : vector<16x32xf32>
    %80 = tpu.matmul %79, %56, %cst_37 {dimension_numbers = #tpu.dot_dimension_numbers<[1], [0], [0], [1], [0, 0, 1, 1], [], []>} : vector<16x16xbf16>, vector<16x32xbf16>, vector<16x32xf32> -> vector<16x32xf32>
    %81 = arith.addf %52, %80 : vector<16x32xf32>
    %cst_38 = arith.constant 0.000000e+00 : f32
    %82 = vector.broadcast %cst_38 : f32 to vector<16x32xf32>
    %83 = arith.maximumf %81, %82 : vector<16x32xf32>
    %84 = tpu.transpose %83, [1, 0] : vector<16x32xf32> -> vector<32x16xf32>
    %c0_39 = arith.constant 0 : index
    %c0_40 = arith.constant 0 : index
    %c0_41 = arith.constant 0 : index
    %85 = vector.load %arg4[%c0_39, %c0_40, %c0_41] : memref<1x32x16xf32, #tpu.memory_space<vmem>>, vector<1x32x16xf32>
    %86 = vector.shape_cast %85 : vector<1x32x16xf32> to vector<32x16xf32>
    %87 = vector.shape_cast %84 : vector<32x16xf32> to vector<1x32x16xf32>
    tpu.vector_store %arg4[%c0_39, %c0_40, %c0_41], %87 {strides = array<i32>} : memref<1x32x16xf32, #tpu.memory_space<vmem>>, vector<1x32x16xf32>,
    return
  }
  func.func @transform_0(%arg0: i32) -> (i32, i32, i32) {
    %c0_i32 = arith.constant 0 : i32
    %c0_i32_0 = arith.constant 0 : i32
    %c0_i32_1 = arith.constant 0 : i32
    return %arg0, %c0_i32, %c0_i32_0 : i32, i32, i32
  }
  func.func @transform_1(%arg0: i32) -> (i32, i32, i32, i32) {
    %c0_i32 = arith.constant 0 : i32
    %c0_i32_0 = arith.constant 0 : i32
    %c0_i32_1 = arith.constant 0 : i32
    %c0_i32_2 = arith.constant 0 : i32
    %c0_i32_3 = arith.constant 0 : i32
    return %c0_i32, %c0_i32_0, %c0_i32_1, %c0_i32_2 : i32, i32, i32, i32
  }
  func.func @transform_2(%arg0: i32) -> (i32, i32, i32) {
    %c0_i32 = arith.constant 0 : i32
    %c0_i32_0 = arith.constant 0 : i32
    %c0_i32_1 = arith.constant 0 : i32
    %c0_i32_2 = arith.constant 0 : i32
    return %c0_i32, %c0_i32_0, %c0_i32_1 : i32, i32, i32
  }
  func.func @transform_3(%arg0: i32) -> (i32, i32, i32) {
    %c0_i32 = arith.constant 0 : i32
    %c0_i32_0 = arith.constant 0 : i32
    %c0_i32_1 = arith.constant 0 : i32
    return %arg0, %c0_i32, %c0_i32_0 : i32, i32, i32
  }
}

</mosaic_0001>

<llo_original>
// kernel: tpu_custom_call.1
$region0: #{tpu_custom_call.1}
  #allocation0 [shape = 'u32[]', space=smem, size = 0x4, offset = 0x4, fixed_abs, tag = 'smem constant byte address 0x4 - core index']
  #allocation1 [shape = 'u32[72,128]{1,0:T(1,128)}', space=vmem, size = 0x9000, scoped, tag = 'internal scratch']
  %s0 = inlined_call_operand.vmem [shape: f32[2,32,16], index: 0, kind: input, shape index: {}]
  %s1 = inlined_call_operand.vmem [shape: bf16[2,3,32,16], index: 1, kind: input, shape index: {}]
  %s2 = inlined_call_operand.vmem [shape: bf16[2,16,32], index: 2, kind: input, shape index: {}]
  %s3 = inlined_call_operand.vmem [shape: f32[2,32,16], index: 3, kind: output, shape index: {}]
  %s4 = sld [smem:[#allocation0]]
  $region45: #{tpu_custom_call.1} parent=0
    _
  %s6 = ssub.s32 1, %s4
  %s7 = scalar_select 0, %s6, %s4
  loop: start=0, step=1, limit=4
  $region2: #{tpu_custom_call.1} parent=0 // loop_pre_header
    _
  $region3: #{tpu_custom_call.1} parent=0 // loop_header
    %s9 = sphi 0, %s13
    %p10 = scmp.ge.s32.totalorder %s9, 4
    %s19 = sphi 0, %s21
    %s22 = sphi 0, %s19
    %s23 = sphi 0, %s22
    %s39 = sphi 0, %s23
    %s43 = sphi 0, %s43
    %s45 = sphi 0, %s43
    %s46 = sphi 0, %s45
    %s60 = sphi 0, %s46
    %s64 = sphi 0, %s64
    %s66 = sphi 0, %s64
    %s67 = sphi 0, %s66
    %s81 = sphi 0, %s67
    %s87 = sphi 0, %s89
    %s90 = sphi 0, %s87
    %s91 = sphi 0, %s90
    %s107 = sphi 0, %s91
  $region4: #{tpu_custom_call.1} parent=0 // loop_header_branch
    %12 = sbr.rel (%p10) target = $region8
  $region5: #{tpu_custom_call.1} parent=0 // loop_body
    %s14 = ssub.s32 %s9, 1
    %s15 = ssub.s32 %s9, 2
    %s16 = sadd.s32 %s9, 1
    %s17 = ssub.s32 %s9, %s16
    %p18 = scmp.eq.s32.totalorder %s17, 0
    %s20 = sadd.s32 %s19, 1
    %s21 = scalar_select %p18, %s19, %s20
    %p24 = pneg %p18
    %p25 = scmp.eq.s32.totalorder %s9, 1
    %p26 = por %p24, %p25
    %p27 = scmp.ne.s32.totalorder %s19, %s22
    %p28 = scmp.eq.s32.totalorder %s9, 0
    %p29 = por %p27, %p28
    %p30 = scmp.ne.s32.totalorder %s19, %s22
    %p31 = scmp.eq.s32.totalorder %s14, 1
    %p32 = por %p30, %p31
    %p33 = scmp.ne.s32.totalorder %s22, %s23
    %p34 = scmp.eq.s32.totalorder %s14, 0
    %p35 = por %p33, %p34
    %p36 = scmp.ne.s32.totalorder %s22, %s23
    %p37 = scmp.eq.s32.totalorder %s15, 1
    %p38 = por %p36, %p37
    %p40 = scmp.ne.s32.totalorder %s23, %s39
    %p41 = scmp.eq.s32.totalorder %s15, 0
    %p42 = por %p40, %p41
    %s44 = sadd.s32 %s43, 1
    %p47 = scmp.eq.s32.totalorder %s9, 1
    %p48 = scmp.ne.s32.totalorder %s43, %s45
    %p49 = scmp.eq.s32.totalorder %s9, 0
    %p50 = por %p48, %p49
    %p51 = scmp.ne.s32.totalorder %s43, %s45
    %p52 = scmp.eq.s32.totalorder %s14, 1
    %p53 = por %p51, %p52
    %p54 = scmp.ne.s32.totalorder %s45, %s46
    %p55 = scmp.eq.s32.totalorder %s14, 0
    %p56 = por %p54, %p55
    %p57 = scmp.ne.s32.totalorder %s45, %s46
    %p58 = scmp.eq.s32.totalorder %s15, 1
    %p59 = por %p57, %p58
    %p61 = scmp.ne.s32.totalorder %s46, %s60
    %p62 = scmp.eq.s32.totalorder %s15, 0
    %p63 = por %p61, %p62
    %s65 = sadd.s32 %s64, 1
    %p68 = scmp.eq.s32.totalorder %s9, 1
    %p69 = scmp.ne.s32.totalorder %s64, %s66
    %p70 = scmp.eq.s32.totalorder %s9, 0
    %p71 = por %p69, %p70
    %p72 = scmp.ne.s32.totalorder %s64, %s66
    %p73 = scmp.eq.s32.totalorder %s14, 1
    %p74 = por %p72, %p73
    %p75 = scmp.ne.s32.totalorder %s66, %s67
    %p76 = scmp.eq.s32.totalorder %s14, 0
    %p77 = por %p75, %p76
    %p78 = scmp.ne.s32.totalorder %s66, %s67
    %p79 = scmp.eq.s32.totalorder %s15, 1
    %p80 = por %p78, %p79
    %p82 = scmp.ne.s32.totalorder %s67, %s81
    %p83 = scmp.eq.s32.totalorder %s15, 0
    %p84 = por %p82, %p83
    %s85 = ssub.s32 %s9, %s16
    %p86 = scmp.eq.s32.totalorder %s85, 0
    %s88 = sadd.s32 %s87, 1
    %s89 = scalar_select %p86, %s87, %s88
    %p92 = pneg %p86
    %p93 = scmp.eq.s32.totalorder %s9, 1
    %p94 = por %p92, %p93
    %p95 = scmp.ne.s32.totalorder %s87, %s90
    %p96 = scmp.eq.s32.totalorder %s9, 0
    %p97 = por %p95, %p96
    %p98 = scmp.ne.s32.totalorder %s87, %s90
    %p99 = scmp.eq.s32.totalorder %s14, 1
    %p100 = por %p98, %p99
    %p101 = scmp.ne.s32.totalorder %s90, %s91
    %p102 = scmp.eq.s32.totalorder %s14, 0
    %p103 = por %p101, %p102
    %p104 = scmp.ne.s32.totalorder %s90, %s91
    %p105 = scmp.eq.s32.totalorder %s15, 1
    %p106 = por %p104, %p105
    %p108 = scmp.ne.s32.totalorder %s91, %s107
    %p109 = scmp.eq.s32.totalorder %s15, 0
    %p110 = por %p108, %p109
    %p111 = scmp.le.s32.totalorder 1, %s9
    %p112 = scmp.lt.s32.totalorder %s9, 3
    %p113 = pnand %p111, %p112
    %p114 = pneg %p113
    // Predicated region
    $region9: #{tpu_custom_call.1} parent=5 // pred_check
      _
    $region10: #{tpu_custom_call.1} parent=5 // pred_check_branch
      %116 = sbr.rel (%p113) target = $region12
    $region11: #{tpu_custom_call.1} parent=5 // pred_region
      %s117 = ssub.s32 %s9, 1
      // Predicated region
      $region13: #{tpu_custom_call.1} parent=11 // pred_check
        %p118 = pneg %p56
      $region14: #{tpu_custom_call.1} parent=11 // pred_check_branch
        %120 = sbr.rel (%p118) target = $region16
      $region15: #{tpu_custom_call.1} parent=11 // pred_region
        _
      $region16: #{tpu_custom_call.1} parent=11 // pred_fallthru
        _
      // Predicated region
      $region17: #{tpu_custom_call.1} parent=11 // pred_check
        %p121 = pneg %p77
      $region18: #{tpu_custom_call.1} parent=11 // pred_check_branch
        %123 = sbr.rel (%p121) target = $region20
      $region19: #{tpu_custom_call.1} parent=11 // pred_region
        _
      $region20: #{tpu_custom_call.1} parent=11 // pred_fallthru
        _
    $region12: #{tpu_custom_call.1} parent=5 // pred_fallthru
      _
    %p124 = scmp.lt.s32.totalorder %s9, 2
    // Predicated region
    $region21: #{tpu_custom_call.1} parent=5 // pred_check
      %p125 = pneg %p124
    $region22: #{tpu_custom_call.1} parent=5 // pred_check_branch
      %127 = sbr.rel (%p125) target = $region24
    $region23: #{tpu_custom_call.1} parent=5 // pred_region
      // Predicated region
      $region25: #{tpu_custom_call.1} parent=23 // pred_check
        %p128 = pneg %p29
      $region26: #{tpu_custom_call.1} parent=23 // pred_check_branch
        %130 = sbr.rel (%p128) target = $region28
      $region27: #{tpu_custom_call.1} parent=23 // pred_region
        %p131 = scmp.lt.s32.totalorder %s9, 1
        %s132 = scalar_select %p131, %s9, 1
        %s133 = smul.addr %s132, 4
        %s134 = smul.addr %s133, 8
        %s135 = scalar_lea.vmem %s0, %s134
      $region28: #{tpu_custom_call.1} parent=23 // pred_fallthru
        _
    $region24: #{tpu_custom_call.1} parent=5 // pred_fallthru
      _
    %p136 = scmp.le.s32.totalorder 1, %s9
    %p137 = scmp.lt.s32.totalorder %s9, 3
    %p138 = pnand %p136, %p137
    %p139 = pneg %p138
    // Predicated region
    $region29: #{tpu_custom_call.1} parent=5 // pred_check
      _
    $region30: #{tpu_custom_call.1} parent=5 // pred_check_branch
      %141 = sbr.rel (%p138) target = $region32
    $region31: #{tpu_custom_call.1} parent=5 // pred_region
      %s142 = ssub.s32 %s9, 1
      %p143 = scmp.lt.s32.totalorder %s14, 1
      %s144 = scalar_select %p143, %s14, 1
      %s145 = smul.addr %s144, 4
      %s146 = smul.addr %s145, 8
      %s147 = scalar_lea.vmem %s0, %s146
      %p148 = pneg %p35
      %p149 = pneg %p32
      %p150 = pneg %p56
      %p151 = pneg %p53
      %p152 = pneg %p77
      %p153 = pneg %p74
      %p154 = pneg %p103
      %p155 = pneg %p100
      %p156 = scmp.lt.s32.totalorder %s14, 1
      %s157 = scalar_select %p156, %s14, 1
      %s158 = smul.addr %s157, 4
      %s159 = smul.addr %s158, 8
      %s160 = scalar_lea.vmem %s3, %s159
      %p161 = scmp.lt.s32.totalorder %s14, 1
      %s162 = scalar_select %p161, %s14, 1
      %s163 = smul.addr %s162, 4
      %s164 = smul.addr %s163, 8
      %s165 = scalar_lea.vmem %s0, %s164
      %p166 = scmp.lt.s32.totalorder %s14, 1
      %s167 = scalar_select %p166, %s14, 1
      %s168 = smul.addr %s167, 4
      %s169 = smul.addr %s168, 8
      %s170 = scalar_lea.vmem %s3, %s169
      %v172 = vld [vmem:[%s165] sm:$0xff]
      %v173 = vld [vmem:[%s165 + $0x8] sm:$0xff]
      %v174 = vld [vmem:[%s165 + $0x10] sm:$0xff]
      %v175 = vld [vmem:[%s165 + $0x18] sm:$0xff]
      %176 = vxpose.xlu0.b32.start [1/16] %v172, 128
      %177 = vxpose.xlu0.b32.cont [2/16] %v173, 128
      %178 = vxpose.xlu0.b32.cont [3/16] %v174, 128
      %179 = vxpose.xlu0.b32.cont [4/16] %v175, 128
      %180 = vxpose.xlu0.b32.cont [5/16] 0.0, 128
      %181 = vxpose.xlu0.b32.cont [6/16] 0.0, 128
      %182 = vxpose.xlu0.b32.cont [7/16] 0.0, 128
      %183 = vxpose.xlu0.b32.cont [8/16] 0.0, 128
      %184 = vxpose.xlu0.b32.cont [9/16] 0.0, 128
      %185 = vxpose.xlu0.b32.cont [10/16] 0.0, 128
      %186 = vxpose.xlu0.b32.cont [11/16] 0.0, 128
      %187 = vxpose.xlu0.b32.cont [12/16] 0.0, 128
      %188 = vxpose.xlu0.b32.cont [13/16] 0.0, 128
      %189 = vxpose.xlu0.b32.cont [14/16] 0.0, 128
      %190 = vxpose.xlu0.b32.cont [15/16] 0.0, 128
      %191 = vxpose.xlu0.b32.end [16/16] 0.0, 128
      %v192 = vpop.trf.xlu0
      %v193 = vpop.trf.xlu0
      %v194 = vpop.trf.xlu0
      %v195 = vpop.trf.xlu0
      %v196 = vpop.trf.xlu0
      %v197 = vpop.trf.xlu0
      %v198 = vpop.trf.xlu0
      %v199 = vpop.trf.xlu0
      %v200 = vpop.trf.xlu0
      %v201 = vpop.trf.xlu0
      %v202 = vpop.trf.xlu0
      %v203 = vpop.trf.xlu0
      %v204 = vpop.trf.xlu0
      %v205 = vpop.trf.xlu0
      %v206 = vpop.trf.xlu0
      %v207 = vpop.trf.xlu0
      %v208 = vlaneseq
      %v209 = vshrl.u32 %v208, 7
      %v210 = vadd.s32 %v209, 8
      %vm211 = vcmp.lt.s32.totalorder %v209, 0
      %v212 = vsub.s32 0, %v209
      %v213 = vsel %vm211, %v212, %v209
      %v214 = vshrl.u32 %v213, 4
      %v215 = vand.u32 %v213, 15
      %v216 = vsub.s32 0, %v215
      %v217 = vsel %vm211, %v216, %v215
      %vm218 = vcmp.lt.s32.totalorder %v210, 0
      %v219 = vsub.s32 0, %v210
      %v220 = vsel %vm218, %v219, %v210
      %v221 = vshrl.u32 %v220, 4
      %v222 = vand.u32 %v220, 15
      %v223 = vsub.s32 0, %v222
      %v224 = vsel %vm218, %v223, %v222
      %vm225 = vcmp.ne.s32.totalorder %v217, 0
      %vm226 = vcmp.ne.s32.totalorder %v224, 0
      %vm227 = vcmp.lt.s32.totalorder %v217, 0
      %vm228 = vcmp.lt.s32.totalorder %v224, 0
      %vm229 = vmand %vm227, %vm225
      %vm230 = vmand %vm228, %vm226
      %v231 = vadd.s32 %v217, 16
      %v232 = vadd.s32 %v224, 16
      %v233 = vsel %vm229, %v231, %v217
      %v234 = vsel %vm230, %v232, %v224
      %vm235 = vcmp.ne.s32.totalorder %v233, 0
      %vm236 = vcmp.ne.s32.totalorder %v234, 0
      %vm237 = vcmp.ne.s32.totalorder %v233, 15
      %vm238 = vcmp.ne.s32.totalorder %v234, 15
      %v239 = vld [vmem:[%s1] sm:$0xf]
      %v240 = vld [vmem:[%s1 + $0x4] sm:$0xf]
      %v241 = vld [vmem:[%s1 + $0x8] sm:$0xf]
      %v242 = vld [vmem:[%s1 + $0xc] sm:$0xf]
      %v243 = vld [vmem:[%s1 + $0x10] sm:$0xf]
      %v244 = vld [vmem:[%s1 + $0x14] sm:$0xf]
      %v245 = vld [vmem:[%s1 + $0x18] sm:$0xf]
      %v246 = vld [vmem:[%s1 + $0x1c] sm:$0xf]
      %v247 = vld [vmem:[%s1 + $0x20] sm:$0xf]
      %v248 = vld [vmem:[%s1 + $0x24] sm:$0xf]
      %v249 = vld [vmem:[%s1 + $0x28] sm:$0xf]
      %v250 = vld [vmem:[%s1 + $0x2c] sm:$0xf]
      %v251 = vld [vmem:[%s2] sm:$0xf]
      %v252 = vld [vmem:[%s2 + $0x4] sm:$0xf]
      %v253 = vmax.f32 %v192, 0.0
      %v254 = vmax.f32 %v193, 0.0
      %v255 = vpack.c.bf16 %v254, %v253
      %v260 = vunpack.c.l.b16 %v239
      %v261 = vunpack.c.l.b16 %v240
      %v262 = vunpack.c.l.b16 %v241
      %v263 = vunpack.c.l.b16 %v242
      %v264 = vpack.c.b16 %v261, %v260
      %v265 = vpack.c.b16 %v263, %v262
      %vm268 = vcmask 261120
      %v270 = vsel %vm268, %v255, 0
      %272 = vmatpush.bf16.msra.mxu0 0
      %273 = vmatpush.bf16.msra.mxu0 0
      %274 = vmatpush.bf16.msra.mxu0 0
      %275 = vmatpush.bf16.msra.mxu0 0
      %276 = vmatpush.bf16.msra.mxu0 0
      %277 = vmatpush.bf16.msra.mxu0 0
      %278 = vmatpush.bf16.msra.mxu0 %v265
      %279 = vmatpush.bf16.msra.mxu0 %v264
      %280 = vmatmul.bf16.gmra.mxu0 %v270
      %v281 = vpop.f32.mrf.mxu0
      %v282 = vadd.f32 0.0, %v281
      %v283 = vpop.f32.mrf.mxu0
      %v284 = vadd.f32 0.0, %v283
      %285 = vdwg.mxu0
      %v290 = vunpack.c.l.b16 %v247
      %v291 = vunpack.c.l.b16 %v248
      %v292 = vunpack.c.l.b16 %v249
      %v293 = vunpack.c.l.b16 %v250
      %v294 = vpack.c.b16 %v291, %v290
      %v295 = vpack.c.b16 %v293, %v292
      %298 = vmatpush.bf16.msra.mxu0 0
      %299 = vmatpush.bf16.msra.mxu0 0
      %300 = vmatpush.bf16.msra.mxu0 0
      %301 = vmatpush.bf16.msra.mxu0 0
      %302 = vmatpush.bf16.msra.mxu0 0
      %303 = vmatpush.bf16.msra.mxu0 0
      %304 = vmatpush.bf16.msra.mxu0 %v295
      %305 = vmatpush.bf16.msra.mxu0 %v294
      %306 = vmatmul.bf16.gmra.mxu0 %v270
      %v307 = vpop.f32.mrf.mxu0
      %v308 = vadd.f32 0.0, %v307
      %v309 = vpop.f32.mrf.mxu0
      %v310 = vadd.f32 0.0, %v309
      %311 = vdwg.mxu0
      %v312 = vrot.slane %v282, 7
      %v313 = vrot.slane %v284, 7
      %vm314 = vcmp.lt.s32.totalorder %v209, 1
      %v315 = vsel %vm314, %v312, %v313
      %v316 = vsel %vm314, %v313, %v312
      %v317 = vsel %vm235, %v316, 0.0
      %v318 = vsel %vm236, %v315, 0.0
      %v323 = vunpack.c.l.b16 %v243
      %v324 = vunpack.c.l.b16 %v244
      %v325 = vunpack.c.l.b16 %v245
      %v326 = vunpack.c.l.b16 %v246
      %v327 = vpack.c.b16 %v324, %v323
      %v328 = vpack.c.b16 %v326, %v325
      %331 = vmatpush.bf16.msra.mxu0 0
      %332 = vmatpush.bf16.msra.mxu0 0
      %333 = vmatpush.bf16.msra.mxu0 0
      %334 = vmatpush.bf16.msra.mxu0 0
      %335 = vmatpush.bf16.msra.mxu0 0
      %336 = vmatpush.bf16.msra.mxu0 0
      %337 = vmatpush.bf16.msra.mxu0 %v328
      %338 = vmatpush.bf16.msra.mxu0 %v327
      %339 = vmatmul.bf16.gmra.mxu0 %v270
      %v340 = vpop.f32.mrf.mxu0
      %v341 = vadd.f32 %v317, %v340
      %v342 = vpop.f32.mrf.mxu0
      %v343 = vadd.f32 %v318, %v342
      %344 = vdwg.mxu0
      %v345 = vrot.slane %v308, 1
      %v346 = vrot.slane %v310, 1
      %vm347 = vcmp.lt.s32.totalorder %v209, 7
      %v348 = vsel %vm347, %v345, %v346
      %v349 = vsel %vm347, %v346, %v345
      %v350 = vsel %vm237, %v348, 0.0
      %v351 = vsel %vm238, %v349, 0.0
      %v352 = vadd.f32 %v341, %v350
      %v353 = vadd.f32 %v343, %v351
      %v354 = vmax.f32 %v352, 0.0
      %v355 = vmax.f32 %v353, 0.0
      %v356 = vpack.c.bf16 %v355, %v354
      %v359 = vunpack.c.l.b16 %v251
      %v360 = vunpack.c.l.b16 %v252
      %v361 = vpack.c.b16 %v360, %v359
      %vm363 = vcmask 130048
      %v365 = vsel %vm363, %v356, 0
      %367 = vmatpush.bf16.msra.mxu0 0
      %368 = vmatpush.bf16.msra.mxu0 0
      %369 = vmatpush.bf16.msra.mxu0 0
      %370 = vmatpush.bf16.msra.mxu0 0
      %371 = vmatpush.bf16.msra.mxu0 0
      %372 = vmatpush.bf16.msra.mxu0 0
      %373 = vmatpush.bf16.msra.mxu0 0
      %374 = vmatpush.bf16.msra.mxu0 %v361
      %375 = vmatmul.bf16.gmra.mxu0 %v365
      %v376 = vpop.f32.mrf.mxu0
      %v377 = vadd.f32 0.0, %v376
      %v378 = vpop.f32.mrf.mxu0
      %v379 = vadd.f32 0.0, %v378
      %380 = vdwg.mxu0
      %v381 = vadd.f32 %v192, %v377
      %v382 = vadd.f32 %v193, %v379
      %s383 = scalar_lea.vmem %s1, 48
      %v384 = vld [vmem:[%s383] sm:$0xf]
      %v385 = vld [vmem:[%s383 + $0x4] sm:$0xf]
      %v386 = vld [vmem:[%s383 + $0x8] sm:$0xf]
      %v387 = vld [vmem:[%s383 + $0xc] sm:$0xf]
      %v388 = vld [vmem:[%s383 + $0x10] sm:$0xf]
      %v389 = vld [vmem:[%s383 + $0x14] sm:$0xf]
      %v390 = vld [vmem:[%s383 + $0x18] sm:$0xf]
      %v391 = vld [vmem:[%s383 + $0x1c] sm:$0xf]
      %v392 = vld [vmem:[%s383 + $0x20] sm:$0xf]
      %v393 = vld [vmem:[%s383 + $0x24] sm:$0xf]
      %v394 = vld [vmem:[%s383 + $0x28] sm:$0xf]
      %v395 = vld [vmem:[%s383 + $0x2c] sm:$0xf]
      %s396 = scalar_lea.vmem %s2, 8
      %v397 = vld [vmem:[%s396] sm:$0xf]
      %v398 = vld [vmem:[%s396 + $0x4] sm:$0xf]
      %v399 = vmax.f32 %v381, 0.0
      %v400 = vmax.f32 %v382, 0.0
      %v401 = vpack.c.bf16 %v400, %v399
      %v406 = vunpack.c.l.b16 %v384
      %v407 = vunpack.c.l.b16 %v385
      %v408 = vunpack.c.l.b16 %v386
      %v409 = vunpack.c.l.b16 %v387
      %v410 = vpack.c.b16 %v407, %v406
      %v411 = vpack.c.b16 %v409, %v408
      %v415 = vsel %vm268, %v401, 0
      %417 = vmatpush.bf16.msra.mxu0 0
      %418 = vmatpush.bf16.msra.mxu0 0
      %419 = vmatpush.bf16.msra.mxu0 0
      %420 = vmatpush.bf16.msra.mxu0 0
      %421 = vmatpush.bf16.msra.mxu0 0
      %422 = vmatpush.bf16.msra.mxu0 0
      %423 = vmatpush.bf16.msra.mxu0 %v411
      %424 = vmatpush.bf16.msra.mxu0 %v410
      %425 = vmatmul.bf16.gmra.mxu0 %v415
      %v426 = vpop.f32.mrf.mxu0
      %v427 = vadd.f32 0.0, %v426
      %v428 = vpop.f32.mrf.mxu0
      %v429 = vadd.f32 0.0, %v428
      %430 = vdwg.mxu0
      %v435 = vunpack.c.l.b16 %v392
      %v436 = vunpack.c.l.b16 %v393
      %v437 = vunpack.c.l.b16 %v394
      %v438 = vunpack.c.l.b16 %v395
      %v439 = vpack.c.b16 %v436, %v435
      %v440 = vpack.c.b16 %v438, %v437
      %443 = vmatpush.bf16.msra.mxu0 0
      %444 = vmatpush.bf16.msra.mxu0 0
      %445 = vmatpush.bf16.msra.mxu0 0
      %446 = vmatpush.bf16.msra.mxu0 0
      %447 = vmatpush.bf16.msra.mxu0 0
      %448 = vmatpush.bf16.msra.mxu0 0
      %449 = vmatpush.bf16.msra.mxu0 %v440
      %450 = vmatpush.bf16.msra.mxu0 %v439
      %451 = vmatmul.bf16.gmra.mxu0 %v415
      %v452 = vpop.f32.mrf.mxu0
      %v453 = vadd.f32 0.0, %v452
      %v454 = vpop.f32.mrf.mxu0
      %v455 = vadd.f32 0.0, %v454
      %456 = vdwg.mxu0
      %v457 = vrot.slane %v427, 7
      %v458 = vrot.slane %v429, 7
      %v459 = vsel %vm314, %v457, %v458
      %v460 = vsel %vm314, %v458, %v457
      %v461 = vsel %vm235, %v460, 0.0
      %v462 = vsel %vm236, %v459, 0.0
      %v467 = vunpack.c.l.b16 %v388
      %v468 = vunpack.c.l.b16 %v389
      %v469 = vunpack.c.l.b16 %v390
      %v470 = vunpack.c.l.b16 %v391
      %v471 = vpack.c.b16 %v468, %v467
      %v472 = vpack.c.b16 %v470, %v469
      %475 = vmatpush.bf16.msra.mxu0 0
      %476 = vmatpush.bf16.msra.mxu0 0
      %477 = vmatpush.bf16.msra.mxu0 0
      %478 = vmatpush.bf16.msra.mxu0 0
      %479 = vmatpush.bf16.msra.mxu0 0
      %480 = vmatpush.bf16.msra.mxu0 0
      %481 = vmatpush.bf16.msra.mxu0 %v472
      %482 = vmatpush.bf16.msra.mxu0 %v471
      %483 = vmatmul.bf16.gmra.mxu0 %v415
      %v484 = vpop.f32.mrf.mxu0
      %v485 = vadd.f32 %v461, %v484
      %v486 = vpop.f32.mrf.mxu0
      %v487 = vadd.f32 %v462, %v486
      %488 = vdwg.mxu0
      %v489 = vrot.slane %v453, 1
      %v490 = vrot.slane %v455, 1
      %v491 = vsel %vm347, %v489, %v490
      %v492 = vsel %vm347, %v490, %v489
      %v493 = vsel %vm237, %v491, 0.0
      %v494 = vsel %vm238, %v492, 0.0
      %v495 = vadd.f32 %v485, %v493
      %v496 = vadd.f32 %v487, %v494
      %v497 = vmax.f32 %v495, 0.0
      %v498 = vmax.f32 %v496, 0.0
      %v499 = vpack.c.bf16 %v498, %v497
      %v502 = vunpack.c.l.b16 %v397
      %v503 = vunpack.c.l.b16 %v398
      %v504 = vpack.c.b16 %v503, %v502
      %v507 = vsel %vm363, %v499, 0
      %509 = vmatpush.bf16.msra.mxu0 0
      %510 = vmatpush.bf16.msra.mxu0 0
      %511 = vmatpush.bf16.msra.mxu0 0
      %512 = vmatpush.bf16.msra.mxu0 0
      %513 = vmatpush.bf16.msra.mxu0 0
      %514 = vmatpush.bf16.msra.mxu0 0
      %515 = vmatpush.bf16.msra.mxu0 0
      %516 = vmatpush.bf16.msra.mxu0 %v504
      %517 = vmatmul.bf16.gmra.mxu0 %v507
      %v518 = vpop.f32.mrf.mxu0
      %v519 = vadd.f32 0.0, %v518
      %v520 = vpop.f32.mrf.mxu0
      %v521 = vadd.f32 0.0, %v520
      %522 = vdwg.mxu0
      %v523 = vadd.f32 %v381, %v519
      %v524 = vadd.f32 %v382, %v521
      %v525 = vmax.f32 %v523, 0.0
      %v526 = vmax.f32 %v524, 0.0
      %527 = vxpose.xlu0.b32.start [1/16] %v525, 128
      %528 = vxpose.xlu0.b32.cont [2/16] %v526, 128
      %529 = vxpose.xlu0.b32.cont [3/16] 0.0, 128
      %530 = vxpose.xlu0.b32.cont [4/16] 0.0, 128
      %531 = vxpose.xlu0.b32.cont [5/16] 0.0, 128
      %532 = vxpose.xlu0.b32.cont [6/16] 0.0, 128
      %533 = vxpose.xlu0.b32.cont [7/16] 0.0, 128
      %534 = vxpose.xlu0.b32.cont [8/16] 0.0, 128
      %535 = vxpose.xlu0.b32.cont [9/16] 0.0, 128
      %536 = vxpose.xlu0.b32.cont [10/16] 0.0, 128
      %537 = vxpose.xlu0.b32.cont [11/16] 0.0, 128
      %538 = vxpose.xlu0.b32.cont [12/16] 0.0, 128
      %539 = vxpose.xlu0.b32.cont [13/16] 0.0, 128
      %540 = vxpose.xlu0.b32.cont [14/16] 0.0, 128
      %541 = vxpose.xlu0.b32.cont [15/16] 0.0, 128
      %542 = vxpose.xlu0.b32.end [16/16] 0.0, 128
      %v543 = vpop.trf.xlu0
      %v544 = vpop.trf.xlu0
      %v545 = vpop.trf.xlu0
      %v546 = vpop.trf.xlu0
      %v547 = vpop.trf.xlu0
      %v548 = vpop.trf.xlu0
      %v549 = vpop.trf.xlu0
      %v550 = vpop.trf.xlu0
      %v551 = vpop.trf.xlu0
      %v552 = vpop.trf.xlu0
      %v553 = vpop.trf.xlu0
      %v554 = vpop.trf.xlu0
      %v555 = vpop.trf.xlu0
      %v556 = vpop.trf.xlu0
      %v557 = vpop.trf.xlu0
      %v558 = vpop.trf.xlu0
      %559 = vst.msk [vmem:[%s170] sm:$0xff] %vm363, %v543
      %560 = vst.msk [vmem:[%s170 + $0x8] sm:$0xff] %vm363, %v544
      %561 = vst.msk [vmem:[%s170 + $0x10] sm:$0xff] %vm363, %v545
      %562 = vst.msk [vmem:[%s170 + $0x18] sm:$0xff] %vm363, %v546
      %p563 = scmp.lt.s32.totalorder %s14, 1
      %s564 = scalar_select %p563, %s14, 1
      %s565 = smul.addr %s564, 4
      %s566 = smul.addr %s565, 8
      %s567 = scalar_lea.vmem %s3, %s566
      // Predicated region
      $region33: #{tpu_custom_call.1} parent=31 // pred_check
        %p568 = pneg %p100
      $region34: #{tpu_custom_call.1} parent=31 // pred_check_branch
        %570 = sbr.rel (%p568) target = $region36
      $region35: #{tpu_custom_call.1} parent=31 // pred_region
        _
      $region36: #{tpu_custom_call.1} parent=31 // pred_fallthru
        _
    $region32: #{tpu_custom_call.1} parent=5 // pred_fallthru
      _
    %p571 = scmp.le.s32.totalorder 2, %s9
    // Predicated region
    $region37: #{tpu_custom_call.1} parent=5 // pred_check
      %p572 = pneg %p571
    $region38: #{tpu_custom_call.1} parent=5 // pred_check_branch
      %574 = sbr.rel (%p572) target = $region40
    $region39: #{tpu_custom_call.1} parent=5 // pred_region
      %s575 = ssub.s32 %s9, 2
      // Predicated region
      $region41: #{tpu_custom_call.1} parent=39 // pred_check
        %p576 = pneg %p106
      $region42: #{tpu_custom_call.1} parent=39 // pred_check_branch
        %578 = sbr.rel (%p576) target = $region44
      $region43: #{tpu_custom_call.1} parent=39 // pred_region
        %p579 = scmp.lt.s32.totalorder %s15, 1
        %s580 = scalar_select %p579, %s15, 1
        %s581 = smul.addr %s580, 4
        %s582 = smul.addr %s581, 8
        %s583 = scalar_lea.vmem %s3, %s582
      $region44: #{tpu_custom_call.1} parent=39 // pred_fallthru
        _
    $region40: #{tpu_custom_call.1} parent=5 // pred_fallthru
      _
  $region6: #{tpu_custom_call.1} parent=0 // loop_footer
    %s13 = sadd.s32 1, %s9
  $region7: #{tpu_custom_call.1} parent=0 // loop_footer_branch
    %8 = sbr.rel target = $region3
  $region8: #{tpu_custom_call.1} parent=0 // loop_exit
    _

</llo_original>
